<compile_context>
chip_gen: v6e
topology: v6e:2x2x1
jax: 0.10.0
libtpu: 0.0.40
codegen_flags: <defaults>
</compile_context>

<pallas_src>
import functools

import jax
import jax.numpy as jnp
from jax import lax
from jax.experimental import pallas as pl
from jax.experimental.pallas import tpu as pltpu


_MiB = 1024 * 1024


def _vmem_capacity_bytes():
    """Per-core VMEM capacity; conservative 64 MiB (v7x) fallback if unknown."""
    try:
        cap = int(getattr(pltpu.get_tpu_info(), "vmem_capacity_bytes", 0))
        if cap > 0:
            return cap
    except Exception:
        pass
    return 64 * _MiB


def _estimate_vmem_bytes(B, D, TR, itemsize, direct_pos, resident_buffers=1):
    resident = resident_buffers * B * D * itemsize            # xT
    tiles = (4 if direct_pos else 2) * TR * D * itemsize      # streamed row/pair tiles (2-deep)
    slabs = 10 * TR * B * 4                                   # live (TR,B) f32/i32 intermediates
    return resident + tiles + slabs + 2 * _MiB                # outputs + compiler scratch margin


def _pick_row_tile(B, D, itemsize, vmem_cap):
    """Largest row tile dividing B whose working set fits ~70% of VMEM."""
    budget = int(0.70 * vmem_cap)
    for tr in (512, 256, 128, 64, 32, 16, 8):
        if B % tr == 0 and _estimate_vmem_bytes(B, D, tr, itemsize, True) <= budget:
            return tr
    return 8 if B % 8 == 0 else B   # tiny / awkward batches: small or single tile


def _batch_criterion_kernel(*refs, negM, T, B, TR, direct_pos, log_chunk):
    if direct_pos:
        x_ref, xp_ref, xT_ref, o_ref = refs
    else:
        x_ref, xT_ref, o_ref = refs
        xp_ref = None

    i = pl.program_id(0)
    row_start = i * TR
    inv_T = jnp.float32(1.0 / T)

    x_tile = x_ref[...]                                   # (TR, D), native dtype
    xT = xT_ref[...]                                      # (D,  B), native dtype

    # Gram tile on the MXU: standard (1,0) contraction against the
    # pre-transposed resident RHS (no per-step transpose), f32 accumulation.
    sim = lax.dot_general(
        x_tile, xT,
        dimension_numbers=(((1,), (0,)), ((), ())),
        preferred_element_type=jnp.float32,
    ) * inv_T                                             # (TR, B) f32

    # Single signed delta = col - global_row gives both masks.
    delta = (lax.broadcasted_iota(jnp.int32, (TR, B), 1)
             - lax.broadcasted_iota(jnp.int32, (TR, B), 0) - row_start)
    masked = jnp.where(delta == 0, jnp.float32(-1e30), sim)   # kill self-similarity

    # Positive-pair logits <x_i, x_{(i+B/2) mod B}> / T.
    if direct_pos:
        xp = xp_ref[...]                                  # (TR, D): rows (i + B/2) mod B
        pos_logit = jnp.sum(
            x_tile.astype(jnp.float32) * xp.astype(jnp.float32),
            axis=1, keepdims=True) * inv_T                # (TR, 1)
    else:
        half = B // 2
        pair = (delta == half) | (delta == half - B)      # wrap-around pair diagonal
        pos_logit = jnp.sum(jnp.where(pair, sim, 0.0), axis=1, keepdims=True)

    # Row-max shift: exact (cancels in every ratio/log below), removes exp overflow.
    m = jnp.max(masked, axis=1, keepdims=True)            # (TR, 1), >= pos_logit
    prob = jnp.exp(masked - m)                            # (TR, B), diag -> 0
    pos = jnp.exp(pos_logit - m)                          # (TR, 1)

    row_sum = jnp.sum(prob, axis=1, keepdims=True)        # (TR, 1)
    if negM == 1.0:
        all_div = row_sum
    else:
        all_div = (row_sum - pos) * jnp.float32(negM) + pos

    inv_div = pl.reciprocal(all_div, approx=False)        # (TR, 1)
    lnPmt = pos * inv_div                                 # (TR, 1)
    Pon = prob * inv_div                                  # (TR, B)
    one_minus = 1.0 - Pon                                 # (log1p(-Pon) would be more
                                                          #  accurate; kept as reference)

    # EUP relief: log of a lane-blocked product instead of one log per element.
    if log_chunk is not None:
        nchunks = B // log_chunk
        prod_acc = one_minus[:, :log_chunk]
        for c in range(1, nchunks):                       # elementwise VPU multiplies
            prod_acc = prod_acc * one_minus[:, c * log_chunk:(c + 1) * log_chunk]
        sum_log = jnp.sum(jnp.log(prod_acc), axis=1, keepdims=True)
    else:
        sum_log = jnp.sum(jnp.log(one_minus), axis=1, keepdims=True)

    lnPon = sum_log - jnp.log(1.0 - lnPmt)                # (TR, 1)
    lnPmt_log = (pos_logit - m) - jnp.log(all_div)        # log(pos/all_div), no exp->log

    partial = jnp.sum(lnPmt_log) + jnp.float32(negM) * jnp.sum(lnPon)

    # Lane-dense, unmasked (8,128) store of the per-tile partial sum.
    o_ref[...] = jnp.full((1, 8, 128), partial, dtype=jnp.float32)


def batch_criterion_loss(x, *, negM, T, row_tile=None, matmul_dtype=None):
    """Pallas TPU implementation of BatchCriterion.forward(x)."""
    B, D = x.shape
    assert B % 2 == 0, "batch must contain positive pairs (even size)"

    # Optional bf16 feed for the Gram matmul on v6e/v7x with large D
    # (accumulation stays f32). Default keeps the input dtype.
    xc = x if matmul_dtype is None else x.astype(matmul_dtype)
    itemsize = xc.dtype.itemsize
    vmem_cap = _vmem_capacity_bytes()

    TR = row_tile if row_tile is not None else _pick_row_tile(B, D, itemsize, vmem_cap)
    assert B % TR == 0
    num_tiles = B // TR
    direct_pos = (num_tiles % 2 == 0)        # pair rows then form their own aligned tile
    log_chunk = 128 if (B % 128 == 0 and B > 128) else None

    xT = xc.T                                # one XLA transpose, outside the kernel

    kernel = functools.partial(
        _batch_criterion_kernel, negM=float(negM), T=float(T), B=B, TR=TR,
        direct_pos=direct_pos, log_chunk=log_chunk)

    # TODO(synk): add a K-tiled (2-D grid over D with an f32 accumulator scratch)
    # fallback for B*D too large to keep xT fully resident even at 0.85*VMEM.

    def _invoke(resident_buffers):
        in_specs = [pl.BlockSpec((TR, D), lambda i: (i, 0))]       # row tile, streamed
        args = [xc]
        if direct_pos:
            shift, nt = num_tiles // 2, num_tiles
            in_specs.append(                                       # positive-pair tile
                pl.BlockSpec((TR, D), lambda i, s=shift, n=nt: ((i + s) % n, 0)))
            args.append(xc)
        xT_kwargs = ({"pipeline_mode": pl.Buffered(1)}             # constant index ->
                     if resident_buffers == 1 else {})             # single buffer is enough
        in_specs.append(pl.BlockSpec((D, B), lambda i: (0, 0), **xT_kwargs))
        args.append(xT)

        need = _estimate_vmem_bytes(B, D, TR, itemsize, direct_pos, resident_buffers)
        vmem_limit = int(min(max(need, 32 * _MiB), int(0.85 * vmem_cap)))

        return pl.pallas_call(
            kernel,
            out_shape=jax.ShapeDtypeStruct((num_tiles, 8, 128), jnp.float32),
            grid=(num_tiles,),
            in_specs=in_specs,
            out_specs=pl.BlockSpec((1, 8, 128), lambda i: (i, 0, 0)),
            compiler_params=pltpu.CompilerParams(
                dimension_semantics=("parallel",),   # disjoint output slabs -> safe
                vmem_limit_bytes=vmem_limit,
            ),
        )(*args)

    try:
        partials = _invoke(1)       # single-buffered resident xT
    except Exception:               # jax/Mosaic without Buffered(1) support: double-buffer xT
        partials = _invoke(2)

    # Tiny final reduction over row tiles done in plain JAX.
    return -(jnp.sum(partials[:, 0, 0])) / B


def _reference_loss(x, *, negM, T):
    """Pure-JAX reference mirroring the PyTorch code exactly."""
    B = x.shape[0]
    rx = jnp.concatenate([x[B // 2:], x[: B // 2]], axis=0)
    pos = jnp.exp(jnp.sum(x * rx, axis=1) / T)
    diag_mat = 1.0 - jnp.eye(B, dtype=x.dtype)
    all_prob = jnp.exp(x @ x.T / T) * diag_mat
    if negM == 1.0:
        all_div = jnp.sum(all_prob, axis=1)
    else:
        all_div = (jnp.sum(all_prob, axis=1) - pos) * negM + pos
    lnPmt = pos / all_div
    lnPon = all_prob / all_div[:, None]
    lnPon = jnp.log(1.0 - lnPon)
    lnPon = jnp.sum(lnPon, axis=1) - jnp.log(1.0 - lnPmt)
    lnPmt = jnp.log(lnPmt)
    lnPmtsum = jnp.sum(lnPmt)
    lnPonsum = jnp.sum(lnPon) * negM
    return -(lnPmtsum + lnPonsum) / B


if __name__ == "__main__":
    k0, k1, k2 = jax.random.split(jax.random.PRNGKey(0), 3)

    # Case 1: tiny batch, negM == 1 branch, single tile -> masked pos-pair path.
    B, D = 8, 32
    x = jax.random.normal(k0, (B, D), dtype=jnp.float32)
    x = x / jnp.linalg.norm(x, axis=1, keepdims=True)
    loss = batch_criterion_loss(x, negM=1.0, T=0.1)
    jax.block_until_ready(loss)
    ref = _reference_loss(x, negM=1.0, T=0.1)
    assert jnp.allclose(loss, ref, rtol=1e-3, atol=1e-3), (loss, ref)

    # Case 2: negM != 1 branch, two row tiles -> direct pair-tile path,
    # parallel grid, modular pair-tile index map.
    B2, D2 = 16, 32
    x2 = jax.random.normal(k1, (B2, D2), dtype=jnp.float32)
    x2 = x2 / jnp.linalg.norm(x2, axis=1, keepdims=True)
    loss2 = batch_criterion_loss(x2, negM=0.5, T=0.5, row_tile=8)
    jax.block_until_ready(loss2)
    ref2 = _reference_loss(x2, negM=0.5, T=0.5)
    assert jnp.allclose(loss2, ref2, rtol=1e-3, atol=1e-3), (loss2, ref2)

    # Case 3: B multiple of 128 -> exercises the lane-blocked product-then-log
    # EUP path and wrap-around pair tiles, still small.
    B3, D3 = 256, 64
    x3 = jax.random.normal(k2, (B3, D3), dtype=jnp.float32)
    x3 = x3 / jnp.linalg.norm(x3, axis=1, keepdims=True)
    loss3 = batch_criterion_loss(x3, negM=0.9, T=0.2, row_tile=64)
    jax.block_until_ready(loss3)
    ref3 = _reference_loss(x3, negM=0.9, T=0.2)
    assert jnp.allclose(loss3, ref3, rtol=1e-3, atol=1e-3), (loss3, ref3)

    print("KERNEL_OK")
</pallas_src>

<mosaic_0001>
module attributes {stable_mosaic.version = 11 : i64} {
  func.func @_batch_criterion_kernel(%arg0: i32, %arg1: memref<8x32xf32, #tpu.memory_space<vmem>>, %arg2: memref<32x8xf32, #tpu.memory_space<vmem>>, %arg3: memref<1x8x128xf32, #tpu.memory_space<vmem>>) attributes {dimension_semantics = [#tpu.dimension_semantics<parallel>], iteration_bounds = array<i64: 1>, scalar_prefetch = 0 : i64, scratch_operands = 0 : i64, tpu.core_type = #tpu.core_type<tc>, window_params = [{transform_indices = @transform_0, window_bounds = array<i64: 8, 32>}, {pipeline_mode = #tpu.pipeline_mode<synchronous>, transform_indices = @transform_1, window_bounds = array<i64: 32, 8>}, {transform_indices = @transform_2, window_bounds = array<i64: 1, 8, 128>}]} {
    %c8_i32 = arith.constant 8 : i32
    %0 = arith.muli %arg0, %c8_i32 : i32
    %c0 = arith.constant 0 : index
    %c0_0 = arith.constant 0 : index
    %1 = vector.load %arg1[%c0, %c0_0] : memref<8x32xf32, #tpu.memory_space<vmem>>, vector<8x32xf32>
    %c0_1 = arith.constant 0 : index
    %c0_2 = arith.constant 0 : index
    %2 = vector.load %arg2[%c0_1, %c0_2] : memref<32x8xf32, #tpu.memory_space<vmem>>, vector<32x8xf32>
    %cst = arith.constant dense<0.000000e+00> : vector<8x8xf32>
    %3 = tpu.matmul %1, %2, %cst {dimension_numbers = #tpu.dot_dimension_numbers<[1], [0], [0], [1], [0, 0, 1, 1], [], []>} : vector<8x32xf32>, vector<32x8xf32>, vector<8x8xf32> -> vector<8x8xf32>
    %cst_3 = arith.constant 1.000000e+01 : f32
    %4 = vector.broadcast %cst_3 : f32 to vector<8x8xf32>
    %5 = arith.mulf %3, %4 : vector<8x8xf32>
    %6 = tpu.iota {dimensions = array<i32: 1>} : vector<8x8xi32>
    %7 = tpu.iota {dimensions = array<i32: 0>} : vector<8x8xi32>
    %8 = arith.subi %6, %7 : vector<8x8xi32>
    %9 = vector.broadcast %0 : i32 to vector<8x8xi32>
    %10 = arith.subi %8, %9 : vector<8x8xi32>
    %c0_i32 = arith.constant 0 : i32
    %11 = vector.broadcast %c0_i32 : i32 to vector<8x8xi32>
    %12 = arith.cmpi eq, %10, %11 : vector<8x8xi32>
    %cst_4 = arith.constant -1.000000e+30 : f32
    %13 = vector.broadcast %cst_4 : f32 to vector<8x8xf32>
    %14 = arith.select %12, %13, %5 : vector<8x8xi1>, vector<8x8xf32>
    %c4_i32 = arith.constant 4 : i32
    %15 = vector.broadcast %c4_i32 : i32 to vector<8x8xi32>
    %16 = arith.cmpi eq, %10, %15 : vector<8x8xi32>
    %c-4_i32 = arith.constant -4 : i32
    %17 = vector.broadcast %c-4_i32 : i32 to vector<8x8xi32>
    %18 = arith.cmpi eq, %10, %17 : vector<8x8xi32>
    %19 = arith.ori %16, %18 : vector<8x8xi1>
    %cst_5 = arith.constant 0.000000e+00 : f32
    %20 = vector.broadcast %cst_5 : f32 to vector<8x8xf32>
    %21 = arith.select %19, %5, %20 : vector<8x8xi1>, vector<8x8xf32>
    %cst_6 = arith.constant dense<0.000000e+00> : vector<8xf32>
    %22 = vector.multi_reduction <add>, %21, %cst_6 [1] : vector<8x8xf32> to vector<8xf32>
    %23 = vector.shape_cast %22 : vector<8xf32> to vector<8x1xf32>
    %cst_7 = arith.constant dense<0xFF800000> : vector<8xf32>
    %24 = vector.multi_reduction <maximumf>, %14, %cst_7 [1] : vector<8x8xf32> to vector<8xf32>
    %25 = vector.shape_cast %24 : vector<8xf32> to vector<8x1xf32>
    %26 = vector.broadcast %25 : vector<8x1xf32> to vector<8x8xf32>
    %27 = arith.subf %14, %26 : vector<8x8xf32>
    %28 = math.exp %27 : vector<8x8xf32>
    %29 = arith.subf %23, %25 : vector<8x1xf32>
    %30 = math.exp %29 : vector<8x1xf32>
    %cst_8 = arith.constant dense<0.000000e+00> : vector<8xf32>
    %31 = vector.multi_reduction <add>, %28, %cst_8 [1] : vector<8x8xf32> to vector<8xf32>
    %32 = vector.shape_cast %31 : vector<8xf32> to vector<8x1xf32>
    %33 = tpu.reciprocal %32 : vector<8x1xf32> -> vector<8x1xf32>
    %34 = arith.mulf %30, %33 : vector<8x1xf32>
    %35 = vector.broadcast %33 : vector<8x1xf32> to vector<8x8xf32>
    %36 = arith.mulf %28, %35 : vector<8x8xf32>
    %cst_9 = arith.constant 1.000000e+00 : f32
    %37 = vector.broadcast %cst_9 : f32 to vector<8x8xf32>
    %38 = arith.subf %37, %36 : vector<8x8xf32>
    %39 = math.log %38 : vector<8x8xf32>
    %cst_10 = arith.constant dense<0.000000e+00> : vector<8xf32>
    %40 = vector.multi_reduction <add>, %39, %cst_10 [1] : vector<8x8xf32> to vector<8xf32>
    %41 = vector.shape_cast %40 : vector<8xf32> to vector<8x1xf32>
    %cst_11 = arith.constant 1.000000e+00 : f32
    %42 = vector.broadcast %cst_11 : f32 to vector<8x1xf32>
    %43 = arith.subf %42, %34 : vector<8x1xf32>
    %44 = math.log %43 : vector<8x1xf32>
    %45 = arith.subf %41, %44 : vector<8x1xf32>
    %46 = arith.subf %23, %25 : vector<8x1xf32>
    %47 = math.log %32 : vector<8x1xf32>
    %48 = arith.subf %46, %47 : vector<8x1xf32>
    %49 = vector.shape_cast %48 : vector<8x1xf32> to vector<1x8x1xf32>
    %cst_12 = arith.constant dense<0.000000e+00> : vector<1xf32>
    %50 = vector.multi_reduction <add>, %49, %cst_12 [1, 2] : vector<1x8x1xf32> to vector<1xf32>
    %51 = vector.shape_cast %50 : vector<1xf32> to vector<1x1x1xf32>
    %52 = vector.extract %51[0, 0, 0] : f32 from vector<1x1x1xf32>
    %53 = vector.shape_cast %45 : vector<8x1xf32> to vector<1x8x1xf32>
    %cst_13 = arith.constant dense<0.000000e+00> : vector<1xf32>
    %54 = vector.multi_reduction <add>, %53, %cst_13 [1, 2] : vector<1x8x1xf32> to vector<1xf32>
    %55 = vector.shape_cast %54 : vector<1xf32> to vector<1x1x1xf32>
    %56 = vector.extract %55[0, 0, 0] : f32 from vector<1x1x1xf32>
    %cst_14 = arith.constant 1.000000e+00 : f32
    %57 = arith.mulf %cst_14, %56 : f32
    %58 = arith.addf %52, %57 : f32
    %59 = vector.broadcast %58 : f32 to vector<1x8x128xf32>
    %c0_15 = arith.constant 0 : index
    %c0_16 = arith.constant 0 : index
    %c0_17 = arith.constant 0 : index
    %60 = vector.load %arg3[%c0_15, %c0_16, %c0_17] : memref<1x8x128xf32, #tpu.memory_space<vmem>>, vector<1x8x128xf32>
    tpu.vector_store %arg3[%c0_15, %c0_16, %c0_17], %59 {strides = array<i32>} : memref<1x8x128xf32, #tpu.memory_space<vmem>>, vector<1x8x128xf32>,
    return
  }
  func.func @transform_0(%arg0: i32) -> (i32, i32) {
    %c0_i32 = arith.constant 0 : i32
    %c0_i32_0 = arith.constant 0 : i32
    return %arg0, %c0_i32 : i32, i32
  }
  func.func @transform_1(%arg0: i32) -> (i32, i32) {
    %c0_i32 = arith.constant 0 : i32
    %c0_i32_0 = arith.constant 0 : i32
    %c0_i32_1 = arith.constant 0 : i32
    return %c0_i32, %c0_i32_0 : i32, i32
  }
  func.func @transform_2(%arg0: i32) -> (i32, i32, i32) {
    %c0_i32 = arith.constant 0 : i32
    %c0_i32_0 = arith.constant 0 : i32
    %c0_i32_1 = arith.constant 0 : i32
    return %arg0, %c0_i32, %c0_i32_0 : i32, i32, i32
  }
}

module attributes {stable_mosaic.version = 11 : i64} {
  func.func @_batch_criterion_kernel(%arg0: i32, %arg1: memref<8x32xf32, #tpu.memory_space<vmem>>, %arg2: memref<32x8xf32, #tpu.memory_space<vmem>>, %arg3: memref<1x8x128xf32, #tpu.memory_space<vmem>>) attributes {dimension_semantics = [#tpu.dimension_semantics<parallel>], iteration_bounds = array<i64: 1>, scalar_prefetch = 0 : i64, scratch_operands = 0 : i64, tpu.core_type = #tpu.core_type<tc>, window_params = [{transform_indices = @transform_0, window_bounds = array<i64: 8, 32>}, {pipeline_mode = #tpu.pipeline_mode<synchronous>, transform_indices = @transform_1, window_bounds = array<i64: 32, 8>}, {transform_indices = @transform_2, window_bounds = array<i64: 1, 8, 128>}]} {
    %c8_i32 = arith.constant 8 : i32
    %0 = arith.muli %arg0, %c8_i32 : i32
    %c0 = arith.constant 0 : index
    %c0_0 = arith.constant 0 : index
    %1 = vector.load %arg1[%c0, %c0_0] : memref<8x32xf32, #tpu.memory_space<vmem>>, vector<8x32xf32>
    %c0_1 = arith.constant 0 : index
    %c0_2 = arith.constant 0 : index
    %2 = vector.load %arg2[%c0_1, %c0_2] : memref<32x8xf32, #tpu.memory_space<vmem>>, vector<32x8xf32>
    %cst = arith.constant dense<0.000000e+00> : vector<8x8xf32>
    %3 = tpu.matmul %1, %2, %cst {dimension_numbers = #tpu.dot_dimension_numbers<[1], [0], [0], [1], [0, 0, 1, 1], [], []>} : vector<8x32xf32>, vector<32x8xf32>, vector<8x8xf32> -> vector<8x8xf32>
    %cst_3 = arith.constant 1.000000e+01 : f32
    %4 = vector.broadcast %cst_3 : f32 to vector<8x8xf32>
    %5 = arith.mulf %3, %4 : vector<8x8xf32>
    %6 = tpu.iota {dimensions = array<i32: 1>} : vector<8x8xi32>
    %7 = tpu.iota {dimensions = array<i32: 0>} : vector<8x8xi32>
    %8 = arith.subi %6, %7 : vector<8x8xi32>
    %9 = vector.broadcast %0 : i32 to vector<8x8xi32>
    %10 = arith.subi %8, %9 : vector<8x8xi32>
    %c0_i32 = arith.constant 0 : i32
    %11 = vector.broadcast %c0_i32 : i32 to vector<8x8xi32>
    %12 = arith.cmpi eq, %10, %11 : vector<8x8xi32>
    %cst_4 = arith.constant -1.000000e+30 : f32
    %13 = vector.broadcast %cst_4 : f32 to vector<8x8xf32>
    %14 = arith.select %12, %13, %5 : vector<8x8xi1>, vector<8x8xf32>
    %c4_i32 = arith.constant 4 : i32
    %15 = vector.broadcast %c4_i32 : i32 to vector<8x8xi32>
    %16 = arith.cmpi eq, %10, %15 : vector<8x8xi32>
    %c-4_i32 = arith.constant -4 : i32
    %17 = vector.broadcast %c-4_i32 : i32 to vector<8x8xi32>
    %18 = arith.cmpi eq, %10, %17 : vector<8x8xi32>
    %19 = arith.ori %16, %18 : vector<8x8xi1>
    %cst_5 = arith.constant 0.000000e+00 : f32
    %20 = vector.broadcast %cst_5 : f32 to vector<8x8xf32>
    %21 = arith.select %19, %5, %20 : vector<8x8xi1>, vector<8x8xf32>
    %cst_6 = arith.constant dense<0.000000e+00> : vector<8xf32>
    %22 = vector.multi_reduction <add>, %21, %cst_6 [1] : vector<8x8xf32> to vector<8xf32>
    %23 = vector.shape_cast %22 : vector<8xf32> to vector<8x1xf32>
    %cst_7 = arith.constant dense<0xFF800000> : vector<8xf32>
    %24 = vector.multi_reduction <maximumf>, %14, %cst_7 [1] : vector<8x8xf32> to vector<8xf32>
    %25 = vector.shape_cast %24 : vector<8xf32> to vector<8x1xf32>
    %26 = vector.broadcast %25 : vector<8x1xf32> to vector<8x8xf32>
    %27 = arith.subf %14, %26 : vector<8x8xf32>
    %28 = math.exp %27 : vector<8x8xf32>
    %29 = arith.subf %23, %25 : vector<8x1xf32>
    %30 = math.exp %29 : vector<8x1xf32>
    %cst_8 = arith.constant dense<0.000000e+00> : vector<8xf32>
    %31 = vector.multi_reduction <add>, %28, %cst_8 [1] : vector<8x8xf32> to vector<8xf32>
    %32 = vector.shape_cast %31 : vector<8xf32> to vector<8x1xf32>
    %33 = tpu.reciprocal %32 : vector<8x1xf32> -> vector<8x1xf32>
    %34 = arith.mulf %30, %33 : vector<8x1xf32>
    %35 = vector.broadcast %33 : vector<8x1xf32> to vector<8x8xf32>
    %36 = arith.mulf %28, %35 : vector<8x8xf32>
    %cst_9 = arith.constant 1.000000e+00 : f32
    %37 = vector.broadcast %cst_9 : f32 to vector<8x8xf32>
    %38 = arith.subf %37, %36 : vector<8x8xf32>
    %39 = math.log %38 : vector<8x8xf32>
    %cst_10 = arith.constant dense<0.000000e+00> : vector<8xf32>
    %40 = vector.multi_reduction <add>, %39, %cst_10 [1] : vector<8x8xf32> to vector<8xf32>
    %41 = vector.shape_cast %40 : vector<8xf32> to vector<8x1xf32>
    %cst_11 = arith.constant 1.000000e+00 : f32
    %42 = vector.broadcast %cst_11 : f32 to vector<8x1xf32>
    %43 = arith.subf %42, %34 : vector<8x1xf32>
    %44 = math.log %43 : vector<8x1xf32>
    %45 = arith.subf %41, %44 : vector<8x1xf32>
    %46 = arith.subf %23, %25 : vector<8x1xf32>
    %47 = math.log %32 : vector<8x1xf32>
    %48 = arith.subf %46, %47 : vector<8x1xf32>
    %49 = vector.shape_cast %48 : vector<8x1xf32> to vector<1x8x1xf32>
    %cst_12 = arith.constant dense<0.000000e+00> : vector<1xf32>
    %50 = vector.multi_reduction <add>, %49, %cst_12 [1, 2] : vector<1x8x1xf32> to vector<1xf32>
    %51 = vector.shape_cast %50 : vector<1xf32> to vector<1x1x1xf32>
    %52 = vector.extract %51[0, 0, 0] : f32 from vector<1x1x1xf32>
    %53 = vector.shape_cast %45 : vector<8x1xf32> to vector<1x8x1xf32>
    %cst_13 = arith.constant dense<0.000000e+00> : vector<1xf32>
    %54 = vector.multi_reduction <add>, %53, %cst_13 [1, 2] : vector<1x8x1xf32> to vector<1xf32>
    %55 = vector.shape_cast %54 : vector<1xf32> to vector<1x1x1xf32>
    %56 = vector.extract %55[0, 0, 0] : f32 from vector<1x1x1xf32>
    %cst_14 = arith.constant 1.000000e+00 : f32
    %57 = arith.mulf %cst_14, %56 : f32
    %58 = arith.addf %52, %57 : f32
    %59 = vector.broadcast %58 : f32 to vector<1x8x128xf32>
    %c0_15 = arith.constant 0 : index
    %c0_16 = arith.constant 0 : index
    %c0_17 = arith.constant 0 : index
    %60 = vector.load %arg3[%c0_15, %c0_16, %c0_17] : memref<1x8x128xf32, #tpu.memory_space<vmem>>, vector<1x8x128xf32>
    tpu.vector_store %arg3[%c0_15, %c0_16, %c0_17], %59 {strides = array<i32>} : memref<1x8x128xf32, #tpu.memory_space<vmem>>, vector<1x8x128xf32>,
    return
  }
  func.func @transform_0(%arg0: i32) -> (i32, i32) {
    %c0_i32 = arith.constant 0 : i32
    %c0_i32_0 = arith.constant 0 : i32
    return %arg0, %c0_i32 : i32, i32
  }
  func.func @transform_1(%arg0: i32) -> (i32, i32) {
    %c0_i32 = arith.constant 0 : i32
    %c0_i32_0 = arith.constant 0 : i32
    %c0_i32_1 = arith.constant 0 : i32
    return %c0_i32, %c0_i32_0 : i32, i32
  }
  func.func @transform_2(%arg0: i32) -> (i32, i32, i32) {
    %c0_i32 = arith.constant 0 : i32
    %c0_i32_0 = arith.constant 0 : i32
    %c0_i32_1 = arith.constant 0 : i32
    return %arg0, %c0_i32, %c0_i32_0 : i32, i32, i32
  }
}

</mosaic_0001>

<llo_original>
// kernel: tpu_custom_call.1
$region0: #{tpu_custom_call.1}
  #allocation0 [shape = 'u32[]', space=smem, size = 0x4, offset = 0x4, fixed_abs, tag = 'smem constant byte address 0x4 - core index']
  #allocation1 [shape = 'u32[144,128]{1,0:T(1,128)}', space=vmem, size = 0x12000, scoped, tag = 'internal scratch']
  %s0 = inlined_call_operand.vmem [shape: f32[8,32], index: 0, kind: input, shape index: {}]
  %s1 = inlined_call_operand.vmem [shape: f32[32,8], index: 1, kind: input, shape index: {}]
  %s2 = inlined_call_operand.hbm [shape: f32[1,8,128], index: 2, kind: output, shape index: {}]
  %s3 = sld [smem:[#allocation0]]
  $region18: #{tpu_custom_call.1} parent=0
    _
  %s5 = ssub.s32 1, %s3
  %s6 = scalar_select 0, %s5, %s3
  $region1: #{tpu_custom_call.1} parent=0
    #allocation2 [shape = 'u8[4096]{0}', space=vmem, size = 0x1000, scoped, tag = 'output window, operand 0, single buffered']
    #allocation3 [shape = 's32[1]{0}', space=sflag, size = 0x4, scoped, tag = 'scoped memory for tpu_custom_call.1']
    %7 = vsyncpa [#allocation3], 0
    // Predicated region
    $region2: #{tpu_custom_call.1} parent=1 // pred_check
      _
    $region3: #{tpu_custom_call.1} parent=1 // pred_check_branch
      %9 = sbr.rel (0) target = $region5
    $region4: #{tpu_custom_call.1} parent=1 // pred_region
      _
    $region5: #{tpu_custom_call.1} parent=1 // pred_fallthru
      _
    // Predicated region
    $region6: #{tpu_custom_call.1} parent=1 // pred_check
      _
    $region7: #{tpu_custom_call.1} parent=1 // pred_check_branch
      %11 = sbr.rel (0) target = $region9
    $region8: #{tpu_custom_call.1} parent=1 // pred_region
      _
    $region9: #{tpu_custom_call.1} parent=1 // pred_fallthru
      _
    %s12 = smul.u32 0, 8
    %v13 = vld [vmem:[%s0] sm:$0xff]
    %v14 = vld [vmem:[%s1] sm:$0xff]
    %v15 = vld [vmem:[%s1 + $0x8] sm:$0xff]
    %v16 = vld [vmem:[%s1 + $0x10] sm:$0xff]
    %v17 = vld [vmem:[%s1 + $0x18] sm:$0xff]
    %vm18 = vcmask 261120
    %v20 = vsel %vm18, %v13, 0
    %22 = vmatprep.subr.mxu0 0.0
    %23 = vmatpush1.msra.mxu0 0.0
    %24 = vmatprep.subr.mxu0 0.0
    %25 = vmatpush1.msra.mxu0 0.0
    %26 = vmatprep.subr.mxu0 0.0
    %27 = vmatpush1.msra.mxu0 0.0
    %28 = vmatprep.subr.mxu0 0.0
    %29 = vmatpush1.msra.mxu0 0.0
    %30 = vmatprep.subr.mxu0 0.0
    %31 = vmatpush1.msra.mxu0 0.0
    %32 = vmatprep.subr.mxu0 0.0
    %33 = vmatpush1.msra.mxu0 0.0
    %34 = vmatprep.subr.mxu0 0.0
    %35 = vmatpush1.msra.mxu0 0.0
    %36 = vmatprep.subr.mxu0 0.0
    %37 = vmatpush1.msra.mxu0 0.0
    %38 = vmatprep.subr.mxu0 0.0
    %39 = vmatpush1.msra.mxu0 0.0
    %40 = vmatprep.subr.mxu0 0.0
    %41 = vmatpush1.msra.mxu0 0.0
    %42 = vmatprep.subr.mxu0 0.0
    %43 = vmatpush1.msra.mxu0 0.0
    %44 = vmatprep.subr.mxu0 0.0
    %45 = vmatpush1.msra.mxu0 0.0
    %46 = vmatprep.subr.mxu0 0.0
    %47 = vmatpush1.msra.mxu0 %v17
    %48 = vmatprep.subr.mxu0 0.0
    %49 = vmatpush1.msra.mxu0 %v16
    %50 = vmatprep.subr.mxu0 0.0
    %51 = vmatpush1.msra.mxu0 %v15
    %52 = vmatprep.subr.mxu0 0.0
    %53 = vmatpush1.msra.mxu0 %v14
    %54 = vmatprep.subr.mxu0 0.0
    %55 = vmatpush2.msra.mxu0 0.0
    %56 = vmatprep.subr.mxu0 0.0
    %57 = vmatpush2.msra.mxu0 0.0
    %58 = vmatprep.subr.mxu0 0.0
    %59 = vmatpush2.msra.mxu0 0.0
    %60 = vmatprep.subr.mxu0 0.0
    %61 = vmatpush2.msra.mxu0 0.0
    %62 = vmatprep.subr.mxu0 0.0
    %63 = vmatpush2.msra.mxu0 0.0
    %64 = vmatprep.subr.mxu0 0.0
    %65 = vmatpush2.msra.mxu0 0.0
    %66 = vmatprep.subr.mxu0 0.0
    %67 = vmatpush2.msra.mxu0 0.0
    %68 = vmatprep.subr.mxu0 0.0
    %69 = vmatpush2.msra.mxu0 0.0
    %70 = vmatprep.subr.mxu0 0.0
    %71 = vmatpush2.msra.mxu0 0.0
    %72 = vmatprep.subr.mxu0 0.0
    %73 = vmatpush2.msra.mxu0 0.0
    %74 = vmatprep.subr.mxu0 0.0
    %75 = vmatpush2.msra.mxu0 0.0
    %76 = vmatprep.subr.mxu0 0.0
    %77 = vmatpush2.msra.mxu0 0.0
    %78 = vmatprep.subr.mxu0 0.0
    %79 = vmatpush2.msra.mxu0 0.0
    %80 = vmatprep.subr.mxu0 0.0
    %81 = vmatpush2.msra.mxu0 0.0
    %82 = vmatprep.subr.mxu0 0.0
    %83 = vmatpush2.msra.mxu0 0.0
    %84 = vmatprep.subr.mxu0 0.0
    %85 = vmatpush2.msra.mxu0 0.0
    %86 = vmatprep.mubr.f32.mxu0 0.0
    %87 = vmatmul.mubr.f32.gmra.mxu0 %v20
    %v88 = vpop.f32.mrf.mxu0
    %v89 = vadd.f32 0.0, %v88
    %v90 = vpop.f32.mrf.mxu0
    %91 = vdwg.mxu0
    %v92 = vmul.f32 %v89, 10.0
    %v93 = vlaneseq
    %v94 = vand.u32 %v93, 127
    %v95 = vlaneseq
    %v96 = vshrl.u32 %v95, 7
    %v97 = vsub.s32 %v94, %v96
    %v98 = vstv %s12
    %v99 = vsub.s32 %v97, %v98
    %vm100 = vcmp.eq.s32.totalorder %v99, 0
    %v101 = vsel %vm100, -1e+30, %v92
    %vm102 = vcmp.eq.s32.totalorder %v99, 4
    %vm103 = vcmp.eq.s32.totalorder %v99, 4294967292
    %vm104 = vmor %vm102, %vm103
    %v105 = vsel %vm104, %v92, 0.0
    %vm106 = vcmask 64512
    %v107 = vsel %vm106, %v105, 0.0
    %108 = vadd.xlane.f32.xlu0 %v107
    %v109 = vpop.xlane.xlu0 %108
    %v110 = vsel %vm106, %v101, -inf
    %111 = vmax.xlane.f32.xlu0 %v110
    %v112 = vpop.xlane.xlu0 %111
    %v113 = vsub.f32 %v101, %v112
    %v114 = vmul.f32 %v113, 1.442695
    %v115 = vpow.pop %v114
    %v116 = vsub.f32 %v109, %v112
    %v117 = vmul.f32 %v116, 1.442695
    %v118 = vpow.pop %v117
    %v119 = vsel %vm106, %v115, 0.0
    %120 = vadd.xlane.f32.xlu0 %v119
    %v121 = vpop.xlane.xlu0 %120
    %v122 = vrcp.pop %v121
    %v123 = vmul.f32 %v118, %v122
    %v124 = vmul.f32 %v115, %v122
    %v125 = vsub.f32 1.0, %v124
    %v126 = vlog2.pop %v125
    %v127 = vmul.f32 %v126, 0.6931472
    %v128 = vsel %vm106, %v127, 0.0
    %129 = vadd.xlane.f32.xlu0 %v128
    %v130 = vpop.xlane.xlu0 %129
    %v131 = vsub.f32 1.0, %v123
    %v132 = vlog2.pop %v131
    %v133 = vmul.f32 %v132, 0.6931472
    %v134 = vsub.f32 %v130, %v133
    %v135 = vlog2.pop %v121
    %v136 = vmul.f32 %v135, 0.6931472
    %v137 = vsub.f32 %v116, %v136
    %vm138 = vcmask 7168
    %v139 = vsel %vm138, %v137, 0.0
    %140 = vadd.xlane.f32.xlu0 %v139
    %v141 = vpop.xlane.xlu0 %140
    %v142 = vrot.slane %v141, 4
    %v143 = vadd.f32 %v141, %v142
    %v144 = vrot.slane %v143, 2
    %v145 = vadd.f32 %v143, %v144
    %v146 = vrot.slane %v145, 1
    %v147 = vadd.f32 %v145, %v146
    %s148 = vtos %v147
    %v149 = vsel %vm138, %v134, 0.0
    %150 = vadd.xlane.f32.xlu0 %v149
    %v151 = vpop.xlane.xlu0 %150
    %v152 = vrot.slane %v151, 4
    %v153 = vadd.f32 %v151, %v152
    %v154 = vrot.slane %v153, 2
    %v155 = vadd.f32 %v153, %v154
    %v156 = vrot.slane %v155, 1
    %v157 = vadd.f32 %v155, %v156
    %s158 = vtos %v157
    %s159 = sadd.f32 %s148, %s158
    %v160 = vstv %s159
    %161 = vst [vmem:[#allocation2] sm:$0xff] %v160
    // Predicated region
    $region10: #{tpu_custom_call.1} parent=1 // pred_check
      _
    $region11: #{tpu_custom_call.1} parent=1 // pred_check_branch
      %163 = sbr.rel (0) target = $region13
    $region12: #{tpu_custom_call.1} parent=1 // pred_region
      %s165 = ssub.s32 128, 128
      %166 = vsyncadd [#allocation3], %s165
      %s168 = sshll.u32 [#allocation2], 4
      %s169 = int_to_ptr.vmem [resolvable:$true] %s168
      %171 = dma.vmem_to_hbm [thread:$0]  %s169, 128, %s2, [#allocation3]
    $region13: #{tpu_custom_call.1} parent=1 // pred_fallthru
      _
    // Predicated region
    $region14: #{tpu_custom_call.1} parent=1 // pred_check
      _
    $region15: #{tpu_custom_call.1} parent=1 // pred_check_branch
      %173 = sbr.rel (0) target = $region17
    $region16: #{tpu_custom_call.1} parent=1 // pred_region
      %174 = dma.done [#allocation3], 128
    $region17: #{tpu_custom_call.1} parent=1 // pred_fallthru
      _
    %175 = vsyncpa [#allocation3], 1

// kernel: tpu_custom_call.1
$region0: #{tpu_custom_call.1}
  #allocation0 [shape = 'u32[]', space=smem, size = 0x4, offset = 0x4, fixed_abs, tag = 'smem constant byte address 0x4 - core index']
  #allocation1 [shape = 'u32[144,128]{1,0:T(1,128)}', space=vmem, size = 0x12000, scoped, tag = 'internal scratch']
  %s0 = inlined_call_operand.vmem [shape: f32[8,32], index: 0, kind: input, shape index: {}]
  %s1 = inlined_call_operand.vmem [shape: f32[32,8], index: 1, kind: input, shape index: {}]
  %s2 = inlined_call_operand.hbm [shape: f32[1,8,128], index: 2, kind: output, shape index: {}]
  %s3 = sld [smem:[#allocation0]]
  $region18: #{tpu_custom_call.1} parent=0
    _
  %s5 = ssub.s32 1, %s3
  %s6 = scalar_select 0, %s5, %s3
  $region1: #{tpu_custom_call.1} parent=0
    #allocation2 [shape = 'u8[4096]{0}', space=vmem, size = 0x1000, scoped, tag = 'output window, operand 0, single buffered']
    #allocation3 [shape = 's32[1]{0}', space=sflag, size = 0x4, scoped, tag = 'scoped memory for tpu_custom_call.1']
    %7 = vsyncpa [#allocation3], 0
    // Predicated region
    $region2: #{tpu_custom_call.1} parent=1 // pred_check
      _
    $region3: #{tpu_custom_call.1} parent=1 // pred_check_branch
      %9 = sbr.rel (0) target = $region5
    $region4: #{tpu_custom_call.1} parent=1 // pred_region
      _
    $region5: #{tpu_custom_call.1} parent=1 // pred_fallthru
      _
    // Predicated region
    $region6: #{tpu_custom_call.1} parent=1 // pred_check
      _
    $region7: #{tpu_custom_call.1} parent=1 // pred_check_branch
      %11 = sbr.rel (0) target = $region9
    $region8: #{tpu_custom_call.1} parent=1 // pred_region
      _
    $region9: #{tpu_custom_call.1} parent=1 // pred_fallthru
      _
    %s12 = smul.u32 0, 8
    %v13 = vld [vmem:[%s0] sm:$0xff]
    %v14 = vld [vmem:[%s1] sm:$0xff]
    %v15 = vld [vmem:[%s1 + $0x8] sm:$0xff]
    %v16 = vld [vmem:[%s1 + $0x10] sm:$0xff]
    %v17 = vld [vmem:[%s1 + $0x18] sm:$0xff]
    %vm18 = vcmask 261120
    %v20 = vsel %vm18, %v13, 0
    %22 = vmatprep.subr.mxu0 0.0
    %23 = vmatpush1.msra.mxu0 0.0
    %24 = vmatprep.subr.mxu0 0.0
    %25 = vmatpush1.msra.mxu0 0.0
    %26 = vmatprep.subr.mxu0 0.0
    %27 = vmatpush1.msra.mxu0 0.0
    %28 = vmatprep.subr.mxu0 0.0
    %29 = vmatpush1.msra.mxu0 0.0
    %30 = vmatprep.subr.mxu0 0.0
    %31 = vmatpush1.msra.mxu0 0.0
    %32 = vmatprep.subr.mxu0 0.0
    %33 = vmatpush1.msra.mxu0 0.0
    %34 = vmatprep.subr.mxu0 0.0
    %35 = vmatpush1.msra.mxu0 0.0
    %36 = vmatprep.subr.mxu0 0.0
    %37 = vmatpush1.msra.mxu0 0.0
    %38 = vmatprep.subr.mxu0 0.0
    %39 = vmatpush1.msra.mxu0 0.0
    %40 = vmatprep.subr.mxu0 0.0
    %41 = vmatpush1.msra.mxu0 0.0
    %42 = vmatprep.subr.mxu0 0.0
    %43 = vmatpush1.msra.mxu0 0.0
    %44 = vmatprep.subr.mxu0 0.0
    %45 = vmatpush1.msra.mxu0 0.0
    %46 = vmatprep.subr.mxu0 0.0
    %47 = vmatpush1.msra.mxu0 %v17
    %48 = vmatprep.subr.mxu0 0.0
    %49 = vmatpush1.msra.mxu0 %v16
    %50 = vmatprep.subr.mxu0 0.0
    %51 = vmatpush1.msra.mxu0 %v15
    %52 = vmatprep.subr.mxu0 0.0
    %53 = vmatpush1.msra.mxu0 %v14
    %54 = vmatprep.subr.mxu0 0.0
    %55 = vmatpush2.msra.mxu0 0.0
    %56 = vmatprep.subr.mxu0 0.0
    %57 = vmatpush2.msra.mxu0 0.0
    %58 = vmatprep.subr.mxu0 0.0
    %59 = vmatpush2.msra.mxu0 0.0
    %60 = vmatprep.subr.mxu0 0.0
    %61 = vmatpush2.msra.mxu0 0.0
    %62 = vmatprep.subr.mxu0 0.0
    %63 = vmatpush2.msra.mxu0 0.0
    %64 = vmatprep.subr.mxu0 0.0
    %65 = vmatpush2.msra.mxu0 0.0
    %66 = vmatprep.subr.mxu0 0.0
    %67 = vmatpush2.msra.mxu0 0.0
    %68 = vmatprep.subr.mxu0 0.0
    %69 = vmatpush2.msra.mxu0 0.0
    %70 = vmatprep.subr.mxu0 0.0
    %71 = vmatpush2.msra.mxu0 0.0
    %72 = vmatprep.subr.mxu0 0.0
    %73 = vmatpush2.msra.mxu0 0.0
    %74 = vmatprep.subr.mxu0 0.0
    %75 = vmatpush2.msra.mxu0 0.0
    %76 = vmatprep.subr.mxu0 0.0
    %77 = vmatpush2.msra.mxu0 0.0
    %78 = vmatprep.subr.mxu0 0.0
    %79 = vmatpush2.msra.mxu0 0.0
    %80 = vmatprep.subr.mxu0 0.0
    %81 = vmatpush2.msra.mxu0 0.0
    %82 = vmatprep.subr.mxu0 0.0
    %83 = vmatpush2.msra.mxu0 0.0
    %84 = vmatprep.subr.mxu0 0.0
    %85 = vmatpush2.msra.mxu0 0.0
    %86 = vmatprep.mubr.f32.mxu0 0.0
    %87 = vmatmul.mubr.f32.gmra.mxu0 %v20
    %v88 = vpop.f32.mrf.mxu0
    %v89 = vadd.f32 0.0, %v88
    %v90 = vpop.f32.mrf.mxu0
    %91 = vdwg.mxu0
    %v92 = vmul.f32 %v89, 10.0
    %v93 = vlaneseq
    %v94 = vand.u32 %v93, 127
    %v95 = vlaneseq
    %v96 = vshrl.u32 %v95, 7
    %v97 = vsub.s32 %v94, %v96
    %v98 = vstv %s12
    %v99 = vsub.s32 %v97, %v98
    %vm100 = vcmp.eq.s32.totalorder %v99, 0
    %v101 = vsel %vm100, -1e+30, %v92
    %vm102 = vcmp.eq.s32.totalorder %v99, 4
    %vm103 = vcmp.eq.s32.totalorder %v99, 4294967292
    %vm104 = vmor %vm102, %vm103
    %v105 = vsel %vm104, %v92, 0.0
    %vm106 = vcmask 64512
    %v107 = vsel %vm106, %v105, 0.0
    %108 = vadd.xlane.f32.xlu0 %v107
    %v109 = vpop.xlane.xlu0 %108
    %v110 = vsel %vm106, %v101, -inf
    %111 = vmax.xlane.f32.xlu0 %v110
    %v112 = vpop.xlane.xlu0 %111
    %v113 = vsub.f32 %v101, %v112
    %v114 = vmul.f32 %v113, 1.442695
    %v115 = vpow.pop %v114
    %v116 = vsub.f32 %v109, %v112
    %v117 = vmul.f32 %v116, 1.442695
    %v118 = vpow.pop %v117
    %v119 = vsel %vm106, %v115, 0.0
    %120 = vadd.xlane.f32.xlu0 %v119
    %v121 = vpop.xlane.xlu0 %120
    %v122 = vrcp.pop %v121
    %v123 = vmul.f32 %v118, %v122
    %v124 = vmul.f32 %v115, %v122
    %v125 = vsub.f32 1.0, %v124
    %v126 = vlog2.pop %v125
    %v127 = vmul.f32 %v126, 0.6931472
    %v128 = vsel %vm106, %v127, 0.0
    %129 = vadd.xlane.f32.xlu0 %v128
    %v130 = vpop.xlane.xlu0 %129
    %v131 = vsub.f32 1.0, %v123
    %v132 = vlog2.pop %v131
    %v133 = vmul.f32 %v132, 0.6931472
    %v134 = vsub.f32 %v130, %v133
    %v135 = vlog2.pop %v121
    %v136 = vmul.f32 %v135, 0.6931472
    %v137 = vsub.f32 %v116, %v136
    %vm138 = vcmask 7168
    %v139 = vsel %vm138, %v137, 0.0
    %140 = vadd.xlane.f32.xlu0 %v139
    %v141 = vpop.xlane.xlu0 %140
    %v142 = vrot.slane %v141, 4
    %v143 = vadd.f32 %v141, %v142
    %v144 = vrot.slane %v143, 2
    %v145 = vadd.f32 %v143, %v144
    %v146 = vrot.slane %v145, 1
    %v147 = vadd.f32 %v145, %v146
    %s148 = vtos %v147
    %v149 = vsel %vm138, %v134, 0.0
    %150 = vadd.xlane.f32.xlu0 %v149
    %v151 = vpop.xlane.xlu0 %150
    %v152 = vrot.slane %v151, 4
    %v153 = vadd.f32 %v151, %v152
    %v154 = vrot.slane %v153, 2
    %v155 = vadd.f32 %v153, %v154
    %v156 = vrot.slane %v155, 1
    %v157 = vadd.f32 %v155, %v156
    %s158 = vtos %v157
    %s159 = sadd.f32 %s148, %s158
    %v160 = vstv %s159
    %161 = vst [vmem:[#allocation2] sm:$0xff] %v160
    // Predicated region
    $region10: #{tpu_custom_call.1} parent=1 // pred_check
      _
    $region11: #{tpu_custom_call.1} parent=1 // pred_check_branch
      %163 = sbr.rel (0) target = $region13
    $region12: #{tpu_custom_call.1} parent=1 // pred_region
      %s165 = ssub.s32 128, 128
      %166 = vsyncadd [#allocation3], %s165
      %s168 = sshll.u32 [#allocation2], 4
      %s169 = int_to_ptr.vmem [resolvable:$true] %s168
      %171 = dma.vmem_to_hbm [thread:$0]  %s169, 128, %s2, [#allocation3]
    $region13: #{tpu_custom_call.1} parent=1 // pred_fallthru
      _
    // Predicated region
    $region14: #{tpu_custom_call.1} parent=1 // pred_check
      _
    $region15: #{tpu_custom_call.1} parent=1 // pred_check_branch
      %173 = sbr.rel (0) target = $region17
    $region16: #{tpu_custom_call.1} parent=1 // pred_region
      %174 = dma.done [#allocation3], 128
    $region17: #{tpu_custom_call.1} parent=1 // pred_fallthru
      _
    %175 = vsyncpa [#allocation3], 1

</llo_original>
